<compile_context>
chip_gen: v7x
topology: tpu7x:2x2x1
jax: 0.10.0
libtpu: 0.0.40
codegen_flags: <defaults>
</compile_context>

<pallas_src>
import functools

import jax
import jax.numpy as jnp
from jax.experimental import pallas as pl
from jax.experimental.pallas import tpu as pltpu


def _round_up(x, m):
    return (x + m - 1) // m * m


def _vmem_capacity_bytes():
    try:
        info = pltpu.get_tpu_info()
        cap = getattr(info, "vmem_capacity_bytes", None)
        if cap:
            return int(cap)
    except Exception:
        pass
    return 64 << 20  # conservative fallback (v7x per-TensorCore VMEM)


def _apply_activation(y, activation):
    """Activation applied on the f32 accumulator (matches PyTorch defaults)."""
    if activation == "relu":
        return jnp.maximum(y, 0.0)
    if activation == "leaky_relu":
        return jnp.where(y >= 0.0, y, 0.01 * y)  # PyTorch default negative_slope
    if activation == "sigmoid":
        return jax.nn.sigmoid(y)
    if activation == "tanh":
        return jnp.tanh(y)
    if activation is None or activation == "None" or activation == "linear":
        return y
    raise ValueError("Invalid activation function")


def _mlp_fused_kernel(x_ref, *refs, num_layers, activation, output_activation):
    """Whole MLP on one [TM, *] batch tile. Intermediates stay in VMEM/vregs."""
    w_refs = refs[:num_layers]
    o_ref = refs[num_layers]

    h = x_ref[...]  # bf16 [TM, K0_pad]
    for i in range(num_layers):
        act = output_activation if i == num_layers - 1 else activation
        # bf16 MXU inputs, f32 accumulation; activations applied in f32.
        y = jnp.dot(h, w_refs[i][...], preferred_element_type=jnp.float32)
        y = _apply_activation(y, act)
        # Carry inter-layer activations in bf16 (half the vreg/spill pressure);
        # numerically identical to casting at the next dot.
        h = y.astype(jnp.bfloat16) if i < num_layers - 1 else y
    o_ref[...] = h.astype(o_ref.dtype)


def _working_set_bytes(tm, k0p, np_out, max_w, weight_bytes, weight_buffers=2):
    act_in = 2 * tm * k0p * 2        # double-buffered bf16 input tiles
    act_out = 2 * tm * np_out * 4    # double-buffered f32 output tiles
    inter = 6 * tm * max_w           # live f32 accumulator + bf16 activation (approx)
    return weight_buffers * weight_bytes + act_in + act_out + inter


def _choose_tm(M, k0p, np_out, max_w, weight_bytes, vmem_cap):
    """Pick the M tile: large enough to amortize grid overhead, small enough for VMEM,
    and (for medium batches) >= 2 grid steps so both v7x TensorCores get work."""
    if M < 16:
        return M                                     # single full-extent tile
    if M <= 512:
        # Two tiles, rounded to 16 rows (bf16 sublane packing).
        return min(M, _round_up(pl.cdiv(M, 2), 16))
    budget = int(0.80 * vmem_cap)
    tm = 128
    for cand in (512, 256, 128):
        if _working_set_bytes(cand, k0p, np_out, max_w, weight_bytes) <= budget:
            tm = cand
            break
    return tm


# Cache: does this JAX build accept pipeline_mode=pl.Buffered(1) on BlockSpec?
_WEIGHT_SINGLE_BUFFER_OK = None


def mlp_forward(x, weights_padded, sizes, padded, activation, output_activation):
    """Run the fused MLP.

    x:               [M, sizes[0]] float32 (unpadded)
    weights_padded:  list of [padded[i], padded[i+1]] bf16 (zero-padded x @ W.T weights)
    Returns          [M, sizes[-1]] float32
    """
    global _WEIGHT_SINGLE_BUFFER_OK

    M, K = x.shape
    assert K == sizes[0]
    n_layers = len(weights_padded)
    k0p, np_out = padded[0], padded[-1]
    max_w = max(padded)
    weight_bytes = sum(int(w.size) * 2 for w in weights_padded)  # bf16

    vmem_cap = _vmem_capacity_bytes()
    tm = _choose_tm(M, k0p, np_out, max_w, weight_bytes, vmem_cap)
    grid = (pl.cdiv(M, tm),)

    # Only the feature axis ever needs padding (zero-padded lanes hit zero weight
    # rows downstream, so they never leak into real outputs).  No M padding: the
    # ragged last batch tile is handled by the grid (masked edge load/store).
    xp = x.astype(jnp.bfloat16)
    if K != k0p:
        xp = jnp.pad(xp, ((0, 0), (0, k0p - K)))

    kernel = functools.partial(_mlp_fused_kernel, num_layers=n_layers,
                               activation=activation,
                               output_activation=output_activation)

    # Advisory cost estimate for XLA's scheduler.
    flops = 2 * M * sum(padded[i] * padded[i + 1] for i in range(n_layers))
    transcendentals = 0
    for i in range(n_layers):
        act = output_activation if i == n_layers - 1 else activation
        if act in ("sigmoid", "tanh"):
            transcendentals += M * padded[i + 1]
    bytes_accessed = int(xp.size) * 2 + weight_bytes + M * np_out * 4
    cost = pl.CostEstimate(flops=flops, transcendentals=transcendentals,
                           bytes_accessed=bytes_accessed)

    # Conservative working-set estimate (assumes double-buffered weights even though
    # we request single buffering) -> always set an explicit scoped-VMEM limit,
    # capped at 90% of physical VMEM so the compiler keeps its own scratch headroom.
    est_vmem = _working_set_bytes(tm, k0p, np_out, max_w, weight_bytes,
                                  weight_buffers=2)
    vmem_limit = int(min(max(est_vmem * 5 // 4, 32 << 20), int(0.9 * vmem_cap)))
    compiler_params = pltpu.CompilerParams(
        dimension_semantics=("parallel",),
        vmem_limit_bytes=vmem_limit,
    )
    # TODO(synk): add a weight-streaming path (memory_space=pl.ANY + pltpu.emit_pipeline
    # over K-tiles) for models whose bf16 weights exceed the per-core VMEM budget
    # (notably v7x's 64 MiB per TensorCore).

    def run(single_buffer_weights):
        in_specs = [pl.BlockSpec((tm, k0p), lambda i: (i, 0))]
        for w in weights_padded:
            kin, kout = w.shape
            if single_buffer_weights:
                # Constant-index resident block: one buffer is enough; halves the
                # weight VMEM footprint vs the default double-buffering.
                spec = pl.BlockSpec((kin, kout), lambda i: (0, 0),
                                    pipeline_mode=pl.Buffered(1))
            else:
                spec = pl.BlockSpec((kin, kout), lambda i: (0, 0))
            in_specs.append(spec)
        out_spec = pl.BlockSpec((tm, np_out), lambda i: (i, 0))
        return pl.pallas_call(
            kernel,
            out_shape=jax.ShapeDtypeStruct((M, np_out), jnp.float32),
            grid=grid,
            in_specs=in_specs,
            out_specs=out_spec,
            compiler_params=compiler_params,
            cost_estimate=cost,
        )(xp, *weights_padded)

    if _WEIGHT_SINGLE_BUFFER_OK is None:
        try:
            out = jax.block_until_ready(run(True))
            _WEIGHT_SINGLE_BUFFER_OK = True
        except Exception:
            _WEIGHT_SINGLE_BUFFER_OK = False
            out = run(False)
    else:
        out = run(_WEIGHT_SINGLE_BUFFER_OK)

    if np_out != sizes[-1]:
        out = out[:, :sizes[-1]]
    return out


class PallasMLP:
    """JAX/Pallas mirror of the PyTorch MLP (BIAS=False), fully fused."""

    def __init__(self, input_size, hidden_sizes, output_size,
                 activation_func="relu", output_activation=None, key=None):
        self.activation_func = activation_func
        self.output_activation = output_activation
        self.sizes = [input_size] + list(hidden_sizes) + [output_size]
        self.padded = [_round_up(s, 128) for s in self.sizes]  # lane-dense feature dims
        if key is None:
            key = jax.random.PRNGKey(0)

        std = 0.01  # matches set_weights(): normal(mean=0, std=0.01)
        self.weights_t = []         # unpadded f32 [in, out] (PyTorch weight.T), for reference
        self.weights_t_padded = []  # zero-padded bf16 [in_pad, out_pad], kernel inputs
        for i in range(len(self.sizes) - 1):
            key, sub = jax.random.split(key)
            w = std * jax.random.normal(sub, (self.sizes[i + 1], self.sizes[i]), jnp.float32)
            w_t = jnp.transpose(w)  # [in, out]
            self.weights_t.append(w_t)
            wp = jnp.zeros((self.padded[i], self.padded[i + 1]), jnp.float32)
            wp = wp.at[:self.sizes[i], :self.sizes[i + 1]].set(w_t)
            self.weights_t_padded.append(wp.astype(jnp.bfloat16))

    def __call__(self, x):
        return mlp_forward(x, self.weights_t_padded, self.sizes, self.padded,
                           self.activation_func, self.output_activation)


def _reference_forward(x, weights_t, activation, output_activation):
    """Pure-JAX reference mirroring the kernel numerics (bf16 dots/activations, f32 accum)."""
    n = len(weights_t)
    h = x.astype(jnp.bfloat16)
    for i, w_t in enumerate(weights_t):
        a = output_activation if i == n - 1 else activation
        y = jnp.dot(h, w_t.astype(jnp.bfloat16), preferred_element_type=jnp.float32)
        y = _apply_activation(y, a)
        h = y.astype(jnp.bfloat16) if i < n - 1 else y
    return h


if __name__ == "__main__":
    key = jax.random.PRNGKey(0)
    key_x, key_w = jax.random.split(key)

    batch = 8
    input_size = 32
    hidden_sizes = [64, 64]
    output_size = 16

    mlp = PallasMLP(input_size, hidden_sizes, output_size,
                    activation_func="relu", output_activation=None, key=key_w)

    x = jax.random.normal(key_x, (batch, input_size), jnp.float32)

    out = mlp(x)
    out = jax.block_until_ready(out)

    ref = _reference_forward(x, mlp.weights_t, "relu", None)
    assert out.shape == (batch, output_size)
    assert jnp.allclose(out, ref, atol=1e-4, rtol=2e-2), float(jnp.max(jnp.abs(out - ref)))

    print("KERNEL_OK")
</pallas_src>

<mosaic_0001>
module attributes {stable_mosaic.version = 11 : i64} {
  func.func @_mlp_fused_kernel(%arg0: i32, %arg1: memref<8x128xbf16, #tpu.memory_space<vmem>>, %arg2: memref<128x128xbf16, #tpu.memory_space<vmem>>, %arg3: memref<128x128xbf16, #tpu.memory_space<vmem>>, %arg4: memref<128x128xbf16, #tpu.memory_space<vmem>>, %arg5: memref<8x128xf32, #tpu.memory_space<vmem>>) attributes {dimension_semantics = [#tpu.dimension_semantics<parallel>], iteration_bounds = array<i64: 1>, scalar_prefetch = 0 : i64, scratch_operands = 0 : i64, tpu.core_type = #tpu.core_type<tc>, window_params = [{transform_indices = @transform_0, window_bounds = array<i64: 8, 128>}, {pipeline_mode = #tpu.pipeline_mode<synchronous>, transform_indices = @transform_1, window_bounds = array<i64: 128, 128>}, {pipeline_mode = #tpu.pipeline_mode<synchronous>, transform_indices = @transform_2, window_bounds = array<i64: 128, 128>}, {pipeline_mode = #tpu.pipeline_mode<synchronous>, transform_indices = @transform_3, window_bounds = array<i64: 128, 128>}, {transform_indices = @transform_4, window_bounds = array<i64: 8, 128>}]} {
    %c0 = arith.constant 0 : index
    %c0_0 = arith.constant 0 : index
    %0 = vector.load %arg1[%c0, %c0_0] : memref<8x128xbf16, #tpu.memory_space<vmem>>, vector<8x128xbf16>
    %c0_1 = arith.constant 0 : index
    %c0_2 = arith.constant 0 : index
    %1 = vector.load %arg2[%c0_1, %c0_2] : memref<128x128xbf16, #tpu.memory_space<vmem>>, vector<128x128xbf16>
    %cst = arith.constant dense<0.000000e+00> : vector<8x128xf32>
    %2 = tpu.matmul %0, %1, %cst {dimension_numbers = #tpu.dot_dimension_numbers<[1], [0], [0], [1], [0, 0, 1, 1], [], []>} : vector<8x128xbf16>, vector<128x128xbf16>, vector<8x128xf32> -> vector<8x128xf32>
    %cst_3 = arith.constant 0.000000e+00 : f32
    %3 = vector.broadcast %cst_3 : f32 to vector<8x128xf32>
    %4 = arith.maximumf %2, %3 : vector<8x128xf32>
    %5 = arith.truncf %4 : vector<8x128xf32> to vector<8x128xbf16>
    %c0_4 = arith.constant 0 : index
    %c0_5 = arith.constant 0 : index
    %6 = vector.load %arg3[%c0_4, %c0_5] : memref<128x128xbf16, #tpu.memory_space<vmem>>, vector<128x128xbf16>
    %cst_6 = arith.constant dense<0.000000e+00> : vector<8x128xf32>
    %7 = tpu.matmul %5, %6, %cst_6 {dimension_numbers = #tpu.dot_dimension_numbers<[1], [0], [0], [1], [0, 0, 1, 1], [], []>} : vector<8x128xbf16>, vector<128x128xbf16>, vector<8x128xf32> -> vector<8x128xf32>
    %cst_7 = arith.constant 0.000000e+00 : f32
    %8 = vector.broadcast %cst_7 : f32 to vector<8x128xf32>
    %9 = arith.maximumf %7, %8 : vector<8x128xf32>
    %10 = arith.truncf %9 : vector<8x128xf32> to vector<8x128xbf16>
    %c0_8 = arith.constant 0 : index
    %c0_9 = arith.constant 0 : index
    %11 = vector.load %arg4[%c0_8, %c0_9] : memref<128x128xbf16, #tpu.memory_space<vmem>>, vector<128x128xbf16>
    %cst_10 = arith.constant dense<0.000000e+00> : vector<8x128xf32>
    %12 = tpu.matmul %10, %11, %cst_10 {dimension_numbers = #tpu.dot_dimension_numbers<[1], [0], [0], [1], [0, 0, 1, 1], [], []>} : vector<8x128xbf16>, vector<128x128xbf16>, vector<8x128xf32> -> vector<8x128xf32>
    %c0_11 = arith.constant 0 : index
    %c0_12 = arith.constant 0 : index
    %13 = vector.load %arg5[%c0_11, %c0_12] : memref<8x128xf32, #tpu.memory_space<vmem>>, vector<8x128xf32>
    tpu.vector_store %arg5[%c0_11, %c0_12], %12 {strides = array<i32>} : memref<8x128xf32, #tpu.memory_space<vmem>>, vector<8x128xf32>,
    return
  }
  func.func @transform_0(%arg0: i32) -> (i32, i32) {
    %c0_i32 = arith.constant 0 : i32
    %c0_i32_0 = arith.constant 0 : i32
    return %arg0, %c0_i32 : i32, i32
  }
  func.func @transform_1(%arg0: i32) -> (i32, i32) {
    %c0_i32 = arith.constant 0 : i32
    %c0_i32_0 = arith.constant 0 : i32
    %c0_i32_1 = arith.constant 0 : i32
    return %c0_i32, %c0_i32_0 : i32, i32
  }
  func.func @transform_2(%arg0: i32) -> (i32, i32) {
    %c0_i32 = arith.constant 0 : i32
    %c0_i32_0 = arith.constant 0 : i32
    %c0_i32_1 = arith.constant 0 : i32
    return %c0_i32, %c0_i32_0 : i32, i32
  }
  func.func @transform_3(%arg0: i32) -> (i32, i32) {
    %c0_i32 = arith.constant 0 : i32
    %c0_i32_0 = arith.constant 0 : i32
    %c0_i32_1 = arith.constant 0 : i32
    return %c0_i32, %c0_i32_0 : i32, i32
  }
  func.func @transform_4(%arg0: i32) -> (i32, i32) {
    %c0_i32 = arith.constant 0 : i32
    %c0_i32_0 = arith.constant 0 : i32
    return %arg0, %c0_i32 : i32, i32
  }
}

module attributes {stable_mosaic.version = 11 : i64} {
  func.func @_mlp_fused_kernel(%arg0: i32, %arg1: memref<8x128xbf16, #tpu.memory_space<vmem>>, %arg2: memref<128x128xbf16, #tpu.memory_space<vmem>>, %arg3: memref<128x128xbf16, #tpu.memory_space<vmem>>, %arg4: memref<128x128xbf16, #tpu.memory_space<vmem>>, %arg5: memref<8x128xf32, #tpu.memory_space<vmem>>) attributes {dimension_semantics = [#tpu.dimension_semantics<parallel>], iteration_bounds = array<i64: 1>, scalar_prefetch = 0 : i64, scratch_operands = 0 : i64, tpu.core_type = #tpu.core_type<tc>, window_params = [{transform_indices = @transform_0, window_bounds = array<i64: 8, 128>}, {pipeline_mode = #tpu.pipeline_mode<synchronous>, transform_indices = @transform_1, window_bounds = array<i64: 128, 128>}, {pipeline_mode = #tpu.pipeline_mode<synchronous>, transform_indices = @transform_2, window_bounds = array<i64: 128, 128>}, {pipeline_mode = #tpu.pipeline_mode<synchronous>, transform_indices = @transform_3, window_bounds = array<i64: 128, 128>}, {transform_indices = @transform_4, window_bounds = array<i64: 8, 128>}]} {
    %c0 = arith.constant 0 : index
    %c0_0 = arith.constant 0 : index
    %0 = vector.load %arg1[%c0, %c0_0] : memref<8x128xbf16, #tpu.memory_space<vmem>>, vector<8x128xbf16>
    %c0_1 = arith.constant 0 : index
    %c0_2 = arith.constant 0 : index
    %1 = vector.load %arg2[%c0_1, %c0_2] : memref<128x128xbf16, #tpu.memory_space<vmem>>, vector<128x128xbf16>
    %cst = arith.constant dense<0.000000e+00> : vector<8x128xf32>
    %2 = tpu.matmul %0, %1, %cst {dimension_numbers = #tpu.dot_dimension_numbers<[1], [0], [0], [1], [0, 0, 1, 1], [], []>} : vector<8x128xbf16>, vector<128x128xbf16>, vector<8x128xf32> -> vector<8x128xf32>
    %cst_3 = arith.constant 0.000000e+00 : f32
    %3 = vector.broadcast %cst_3 : f32 to vector<8x128xf32>
    %4 = arith.maximumf %2, %3 : vector<8x128xf32>
    %5 = arith.truncf %4 : vector<8x128xf32> to vector<8x128xbf16>
    %c0_4 = arith.constant 0 : index
    %c0_5 = arith.constant 0 : index
    %6 = vector.load %arg3[%c0_4, %c0_5] : memref<128x128xbf16, #tpu.memory_space<vmem>>, vector<128x128xbf16>
    %cst_6 = arith.constant dense<0.000000e+00> : vector<8x128xf32>
    %7 = tpu.matmul %5, %6, %cst_6 {dimension_numbers = #tpu.dot_dimension_numbers<[1], [0], [0], [1], [0, 0, 1, 1], [], []>} : vector<8x128xbf16>, vector<128x128xbf16>, vector<8x128xf32> -> vector<8x128xf32>
    %cst_7 = arith.constant 0.000000e+00 : f32
    %8 = vector.broadcast %cst_7 : f32 to vector<8x128xf32>
    %9 = arith.maximumf %7, %8 : vector<8x128xf32>
    %10 = arith.truncf %9 : vector<8x128xf32> to vector<8x128xbf16>
    %c0_8 = arith.constant 0 : index
    %c0_9 = arith.constant 0 : index
    %11 = vector.load %arg4[%c0_8, %c0_9] : memref<128x128xbf16, #tpu.memory_space<vmem>>, vector<128x128xbf16>
    %cst_10 = arith.constant dense<0.000000e+00> : vector<8x128xf32>
    %12 = tpu.matmul %10, %11, %cst_10 {dimension_numbers = #tpu.dot_dimension_numbers<[1], [0], [0], [1], [0, 0, 1, 1], [], []>} : vector<8x128xbf16>, vector<128x128xbf16>, vector<8x128xf32> -> vector<8x128xf32>
    %c0_11 = arith.constant 0 : index
    %c0_12 = arith.constant 0 : index
    %13 = vector.load %arg5[%c0_11, %c0_12] : memref<8x128xf32, #tpu.memory_space<vmem>>, vector<8x128xf32>
    tpu.vector_store %arg5[%c0_11, %c0_12], %12 {strides = array<i32>} : memref<8x128xf32, #tpu.memory_space<vmem>>, vector<8x128xf32>,
    return
  }
  func.func @transform_0(%arg0: i32) -> (i32, i32) {
    %c0_i32 = arith.constant 0 : i32
    %c0_i32_0 = arith.constant 0 : i32
    return %arg0, %c0_i32 : i32, i32
  }
  func.func @transform_1(%arg0: i32) -> (i32, i32) {
    %c0_i32 = arith.constant 0 : i32
    %c0_i32_0 = arith.constant 0 : i32
    %c0_i32_1 = arith.constant 0 : i32
    return %c0_i32, %c0_i32_0 : i32, i32
  }
  func.func @transform_2(%arg0: i32) -> (i32, i32) {
    %c0_i32 = arith.constant 0 : i32
    %c0_i32_0 = arith.constant 0 : i32
    %c0_i32_1 = arith.constant 0 : i32
    return %c0_i32, %c0_i32_0 : i32, i32
  }
  func.func @transform_3(%arg0: i32) -> (i32, i32) {
    %c0_i32 = arith.constant 0 : i32
    %c0_i32_0 = arith.constant 0 : i32
    %c0_i32_1 = arith.constant 0 : i32
    return %c0_i32, %c0_i32_0 : i32, i32
  }
  func.func @transform_4(%arg0: i32) -> (i32, i32) {
    %c0_i32 = arith.constant 0 : i32
    %c0_i32_0 = arith.constant 0 : i32
    return %arg0, %c0_i32 : i32, i32
  }
}

</mosaic_0001>

<llo_original>
// kernel: tpu_custom_call.1
$region0: #{tpu_custom_call.1}
  #allocation0 [shape = 'u32[]', space=smem, size = 0x4, offset = 0x4, fixed_abs, tag = 'smem constant byte address 0x4 - core index']
  #allocation1 [shape = 'u32[144,128]{1,0:T(1,128)}', space=vmem, size = 0x12000, scoped, tag = 'internal scratch']
  %s0 = inlined_call_operand.hbm [shape: bf16[8,128], index: 0, kind: input, shape index: {}]
  %s1 = inlined_call_operand.hbm [shape: bf16[128,128], index: 1, kind: input, shape index: {}]
  %s2 = inlined_call_operand.hbm [shape: bf16[128,128], index: 2, kind: input, shape index: {}]
  %s3 = inlined_call_operand.hbm [shape: bf16[128,128], index: 3, kind: input, shape index: {}]
  %s4 = inlined_call_operand.hbm [shape: f32[8,128], index: 4, kind: output, shape index: {}]
  %s5 = sld [smem:[#allocation0]]
  $region42: #{tpu_custom_call.1} parent=0
    _
  %s7 = ssub.s32 1, %s5
  %s8 = scalar_select 0, %s7, %s5
  $region1: #{tpu_custom_call.1} parent=0
    #allocation2 [shape = 'u8[2048]{0}', space=vmem, size = 0x800, scoped, tag = 'input window, operand 0, single buffered']
    #allocation3 [shape = 's32[1]{0}', space=sflag, size = 0x4, scoped, tag = 'scoped memory for tpu_custom_call.1']
    #allocation4 [shape = 's32[1]{0}', space=sflag, size = 0x4, scoped, tag = 'scoped memory for tpu_custom_call.1']
    #allocation5 [shape = 'u8[32768]{0}', space=vmem, size = 0x8000, scoped, tag = 'input window, operand 1, single buffered']
    #allocation6 [shape = 's32[1]{0}', space=sflag, size = 0x4, scoped, tag = 'scoped memory for tpu_custom_call.1']
    #allocation7 [shape = 'u8[32768]{0}', space=vmem, size = 0x8000, scoped, tag = 'input window, operand 2, single buffered']
    #allocation8 [shape = 'u8[32768]{0}', space=vmem, size = 0x8000, scoped, tag = 'input window, operand 3, single buffered']
    #allocation9 [shape = 's32[1]{0}', space=sflag, size = 0x4, scoped, tag = 'scoped memory for tpu_custom_call.1']
    #allocation10 [shape = 'u8[4096]{0}', space=vmem, size = 0x1000, scoped, tag = 'output window, operand 0, single buffered']
    %9 = vsyncpa [#allocation3], 0
    %10 = vsyncpa [#allocation6], 0
    %11 = vsyncpa [#allocation9], 0
    %12 = vsyncpa [#allocation4], 0
    // Predicated region
    $region2: #{tpu_custom_call.1} parent=1 // pred_check
      _
    $region3: #{tpu_custom_call.1} parent=1 // pred_check_branch
      %14 = sbr.rel (0) target = $region5
    $region4: #{tpu_custom_call.1} parent=1 // pred_region
      %s16 = ssub.s32 64, 64
      %17 = vsyncadd [#allocation3], %s16
      %s19 = sshll.u32 [#allocation2], 4
      %s20 = int_to_ptr.vmem [resolvable:$true] %s19
      %22 = dma.hbm_to_vmem [thread:$0]  %s0, 64, %s20, [#allocation3]
    $region5: #{tpu_custom_call.1} parent=1 // pred_fallthru
      _
    // Predicated region
    $region6: #{tpu_custom_call.1} parent=1 // pred_check
      _
    $region7: #{tpu_custom_call.1} parent=1 // pred_check_branch
      %24 = sbr.rel (0) target = $region9
    $region8: #{tpu_custom_call.1} parent=1 // pred_region
      %s26 = ssub.s32 1024, 1024
      %27 = vsyncadd [#allocation6], %s26
      %s28 = sshll.u32 [#allocation5], 4
      %s29 = int_to_ptr.vmem [resolvable:$true] %s28
      %34 = dma.hbm_to_vmem [thread:$0]  %s1, 1024, %s29, [#allocation6], 64, 64, 4
    $region9: #{tpu_custom_call.1} parent=1 // pred_fallthru
      _
    // Predicated region
    $region10: #{tpu_custom_call.1} parent=1 // pred_check
      _
    $region11: #{tpu_custom_call.1} parent=1 // pred_check_branch
      %36 = sbr.rel (0) target = $region13
    $region12: #{tpu_custom_call.1} parent=1 // pred_region
      %s38 = ssub.s32 1024, 1024
      %39 = vsyncadd [#allocation6], %s38
      %s40 = sshll.u32 [#allocation7], 4
      %s41 = int_to_ptr.vmem [resolvable:$true] %s40
      %46 = dma.hbm_to_vmem [thread:$0]  %s2, 1024, %s41, [#allocation6], 64, 64, 4
    $region13: #{tpu_custom_call.1} parent=1 // pred_fallthru
      _
    // Predicated region
    $region14: #{tpu_custom_call.1} parent=1 // pred_check
      _
    $region15: #{tpu_custom_call.1} parent=1 // pred_check_branch
      %48 = sbr.rel (0) target = $region17
    $region16: #{tpu_custom_call.1} parent=1 // pred_region
      %s50 = ssub.s32 1024, 1024
      %51 = vsyncadd [#allocation9], %s50
      %s52 = sshll.u32 [#allocation8], 4
      %s53 = int_to_ptr.vmem [resolvable:$true] %s52
      %58 = dma.hbm_to_vmem [thread:$0]  %s3, 1024, %s53, [#allocation9], 64, 64, 4
    $region17: #{tpu_custom_call.1} parent=1 // pred_fallthru
      _
    // Predicated region
    $region18: #{tpu_custom_call.1} parent=1 // pred_check
      _
    $region19: #{tpu_custom_call.1} parent=1 // pred_check_branch
      %60 = sbr.rel (0) target = $region21
    $region20: #{tpu_custom_call.1} parent=1 // pred_region
      %61 = dma.done [#allocation3], 64
    $region21: #{tpu_custom_call.1} parent=1 // pred_fallthru
      _
    // Predicated region
    $region22: #{tpu_custom_call.1} parent=1 // pred_check
      _
    $region23: #{tpu_custom_call.1} parent=1 // pred_check_branch
      %63 = sbr.rel (0) target = $region25
    $region24: #{tpu_custom_call.1} parent=1 // pred_region
      %64 = dma.done [#allocation6], 1024
    $region25: #{tpu_custom_call.1} parent=1 // pred_fallthru
      _
    // Predicated region
    $region26: #{tpu_custom_call.1} parent=1 // pred_check
      _
    $region27: #{tpu_custom_call.1} parent=1 // pred_check_branch
      %66 = sbr.rel (0) target = $region29
    $region28: #{tpu_custom_call.1} parent=1 // pred_region
      %67 = dma.done [#allocation6], 1024
    $region29: #{tpu_custom_call.1} parent=1 // pred_fallthru
      _
    // Predicated region
    $region30: #{tpu_custom_call.1} parent=1 // pred_check
      _
    $region31: #{tpu_custom_call.1} parent=1 // pred_check_branch
      %69 = sbr.rel (0) target = $region33
    $region32: #{tpu_custom_call.1} parent=1 // pred_region
      %70 = dma.done [#allocation9], 1024
    $region33: #{tpu_custom_call.1} parent=1 // pred_fallthru
      _
    %v72 = vld [vmem:[#allocation2] sm:$0xf]
    %v73 = vld [vmem:[#allocation5] sm:$0xf]
    %v74 = vld [vmem:[#allocation5 + $0x4] sm:$0xf]
    %v75 = vld [vmem:[#allocation5 + $0x8] sm:$0xf]
    %v76 = vld [vmem:[#allocation5 + $0xc] sm:$0xf]
    %v77 = vld [vmem:[#allocation5 + $0x10] sm:$0xf]
    %v78 = vld [vmem:[#allocation5 + $0x14] sm:$0xf]
    %v79 = vld [vmem:[#allocation5 + $0x18] sm:$0xf]
    %v80 = vld [vmem:[#allocation5 + $0x1c] sm:$0xf]
    %v81 = vld [vmem:[#allocation5 + $0x20] sm:$0xf]
    %v82 = vld [vmem:[#allocation5 + $0x24] sm:$0xf]
    %v83 = vld [vmem:[#allocation5 + $0x28] sm:$0xf]
    %v84 = vld [vmem:[#allocation5 + $0x2c] sm:$0xf]
    %v85 = vld [vmem:[#allocation5 + $0x30] sm:$0xf]
    %v86 = vld [vmem:[#allocation5 + $0x34] sm:$0xf]
    %v87 = vld [vmem:[#allocation5 + $0x38] sm:$0xf]
    %v88 = vld [vmem:[#allocation5 + $0x3c] sm:$0xf]
    %v105 = vunpack.c.l.b16 %v73
    %v106 = vunpack.c.l.b16 %v74
    %v107 = vunpack.c.l.b16 %v75
    %v108 = vunpack.c.l.b16 %v76
    %v109 = vunpack.c.l.b16 %v77
    %v110 = vunpack.c.l.b16 %v78
    %v111 = vunpack.c.l.b16 %v79
    %v112 = vunpack.c.l.b16 %v80
    %v113 = vunpack.c.l.b16 %v81
    %v114 = vunpack.c.l.b16 %v82
    %v115 = vunpack.c.l.b16 %v83
    %v116 = vunpack.c.l.b16 %v84
    %v117 = vunpack.c.l.b16 %v85
    %v118 = vunpack.c.l.b16 %v86
    %v119 = vunpack.c.l.b16 %v87
    %v120 = vunpack.c.l.b16 %v88
    %v121 = vpack.c.b16 %v106, %v105
    %v122 = vpack.c.b16 %v108, %v107
    %v123 = vpack.c.b16 %v110, %v109
    %v124 = vpack.c.b16 %v112, %v111
    %v125 = vpack.c.b16 %v114, %v113
    %v126 = vpack.c.b16 %v116, %v115
    %v127 = vpack.c.b16 %v118, %v117
    %v128 = vpack.c.b16 %v120, %v119
    %137 = vmatprep.subr.bf16.mxu0 0
    %138 = vmatpush1.bf16.msra.mxu0 %v121
    %139 = vmatprep.subr.bf16.mxu0 0
    %140 = vmatpush1.bf16.msra.mxu0 %v122
    %141 = vmatprep.subr.bf16.mxu0 0
    %142 = vmatpush1.bf16.msra.mxu0 %v123
    %143 = vmatprep.subr.bf16.mxu0 0
    %144 = vmatpush1.bf16.msra.mxu0 %v124
    %145 = vmatprep.subr.bf16.mxu0 0
    %146 = vmatpush1.bf16.msra.mxu0 %v125
    %147 = vmatprep.subr.bf16.mxu0 0
    %148 = vmatpush1.bf16.msra.mxu0 %v126
    %149 = vmatprep.subr.bf16.mxu0 0
    %150 = vmatpush1.bf16.msra.mxu0 %v127
    %151 = vmatprep.subr.bf16.mxu0 0
    %152 = vmatpush1.bf16.msra.mxu0 %v128
    %153 = vmatprep.subr.bf16.mxu0 0
    %154 = vmatpush1.bf16.msra.mxu0 0
    %155 = vmatprep.subr.bf16.mxu0 0
    %156 = vmatpush1.bf16.msra.mxu0 0
    %157 = vmatprep.subr.bf16.mxu0 0
    %158 = vmatpush1.bf16.msra.mxu0 0
    %159 = vmatprep.subr.bf16.mxu0 0
    %160 = vmatpush1.bf16.msra.mxu0 0
    %161 = vmatprep.subr.bf16.mxu0 0
    %162 = vmatpush1.bf16.msra.mxu0 0
    %163 = vmatprep.subr.bf16.mxu0 0
    %164 = vmatpush1.bf16.msra.mxu0 0
    %165 = vmatprep.subr.bf16.mxu0 0
    %166 = vmatpush1.bf16.msra.mxu0 0
    %167 = vmatprep.subr.bf16.mxu0 0
    %168 = vmatpush1.bf16.msra.mxu0 0
    %169 = vmatprep.mubr.bf16.mxu0 0
    %170 = vmatmul.mubr.bf16.gmra.mrb[0].mxu0 %v72
    %v171 = vpop.f32.mrb[0].mxu0
    %v172 = vadd.f32 0.0, %v171
    %v173 = vpop.f32.mrb[0].mxu0
    %v174 = vpop.f32.mrb[0].mxu0
    %v175 = vpop.f32.mrb[0].mxu0
    %176 = vdwg.mxu0
    %v177 = vmax.f32 %v172, 0.0
    %v178 = vpack.c.bf16 %v177, %v177
    %v179 = vld [vmem:[#allocation7] sm:$0xf]
    %v180 = vld [vmem:[#allocation7 + $0x4] sm:$0xf]
    %v181 = vld [vmem:[#allocation7 + $0x8] sm:$0xf]
    %v182 = vld [vmem:[#allocation7 + $0xc] sm:$0xf]
    %v183 = vld [vmem:[#allocation7 + $0x10] sm:$0xf]
    %v184 = vld [vmem:[#allocation7 + $0x14] sm:$0xf]
    %v185 = vld [vmem:[#allocation7 + $0x18] sm:$0xf]
    %v186 = vld [vmem:[#allocation7 + $0x1c] sm:$0xf]
    %v187 = vld [vmem:[#allocation7 + $0x20] sm:$0xf]
    %v188 = vld [vmem:[#allocation7 + $0x24] sm:$0xf]
    %v189 = vld [vmem:[#allocation7 + $0x28] sm:$0xf]
    %v190 = vld [vmem:[#allocation7 + $0x2c] sm:$0xf]
    %v191 = vld [vmem:[#allocation7 + $0x30] sm:$0xf]
    %v192 = vld [vmem:[#allocation7 + $0x34] sm:$0xf]
    %v193 = vld [vmem:[#allocation7 + $0x38] sm:$0xf]
    %v194 = vld [vmem:[#allocation7 + $0x3c] sm:$0xf]
    %v211 = vunpack.c.l.b16 %v179
    %v212 = vunpack.c.l.b16 %v180
    %v213 = vunpack.c.l.b16 %v181
    %v214 = vunpack.c.l.b16 %v182
    %v215 = vunpack.c.l.b16 %v183
    %v216 = vunpack.c.l.b16 %v184
    %v217 = vunpack.c.l.b16 %v185
    %v218 = vunpack.c.l.b16 %v186
    %v219 = vunpack.c.l.b16 %v187
    %v220 = vunpack.c.l.b16 %v188
    %v221 = vunpack.c.l.b16 %v189
    %v222 = vunpack.c.l.b16 %v190
    %v223 = vunpack.c.l.b16 %v191
    %v224 = vunpack.c.l.b16 %v192
    %v225 = vunpack.c.l.b16 %v193
    %v226 = vunpack.c.l.b16 %v194
    %v227 = vpack.c.b16 %v212, %v211
    %v228 = vpack.c.b16 %v214, %v213
    %v229 = vpack.c.b16 %v216, %v215
    %v230 = vpack.c.b16 %v218, %v217
    %v231 = vpack.c.b16 %v220, %v219
    %v232 = vpack.c.b16 %v222, %v221
    %v233 = vpack.c.b16 %v224, %v223
    %v234 = vpack.c.b16 %v226, %v225
    %243 = vmatprep.subr.bf16.mxu0 0
    %244 = vmatpush1.bf16.msra.mxu0 %v227
    %245 = vmatprep.subr.bf16.mxu0 0
    %246 = vmatpush1.bf16.msra.mxu0 %v228
    %247 = vmatprep.subr.bf16.mxu0 0
    %248 = vmatpush1.bf16.msra.mxu0 %v229
    %249 = vmatprep.subr.bf16.mxu0 0
    %250 = vmatpush1.bf16.msra.mxu0 %v230
    %251 = vmatprep.subr.bf16.mxu0 0
    %252 = vmatpush1.bf16.msra.mxu0 %v231
    %253 = vmatprep.subr.bf16.mxu0 0
    %254 = vmatpush1.bf16.msra.mxu0 %v232
    %255 = vmatprep.subr.bf16.mxu0 0
    %256 = vmatpush1.bf16.msra.mxu0 %v233
    %257 = vmatprep.subr.bf16.mxu0 0
    %258 = vmatpush1.bf16.msra.mxu0 %v234
    %259 = vmatprep.subr.bf16.mxu0 0
    %260 = vmatpush1.bf16.msra.mxu0 0
    %261 = vmatprep.subr.bf16.mxu0 0
    %262 = vmatpush1.bf16.msra.mxu0 0
    %263 = vmatprep.subr.bf16.mxu0 0
    %264 = vmatpush1.bf16.msra.mxu0 0
    %265 = vmatprep.subr.bf16.mxu0 0
    %266 = vmatpush1.bf16.msra.mxu0 0
    %267 = vmatprep.subr.bf16.mxu0 0
    %268 = vmatpush1.bf16.msra.mxu0 0
    %269 = vmatprep.subr.bf16.mxu0 0
    %270 = vmatpush1.bf16.msra.mxu0 0
    %271 = vmatprep.subr.bf16.mxu0 0
    %272 = vmatpush1.bf16.msra.mxu0 0
    %273 = vmatprep.subr.bf16.mxu0 0
    %274 = vmatpush1.bf16.msra.mxu0 0
    %275 = vmatprep.mubr.bf16.mxu0 0
    %276 = vmatmul.mubr.bf16.gmra.mrb[0].mxu0 %v178
    %v277 = vpop.f32.mrb[0].mxu0
    %v278 = vadd.f32 0.0, %v277
    %v279 = vpop.f32.mrb[0].mxu0
    %v280 = vpop.f32.mrb[0].mxu0
    %v281 = vpop.f32.mrb[0].mxu0
    %282 = vdwg.mxu0
    %v283 = vmax.f32 %v278, 0.0
    %v284 = vpack.c.bf16 %v283, %v283
    %v285 = vld [vmem:[#allocation8] sm:$0xf]
    %v286 = vld [vmem:[#allocation8 + $0x4] sm:$0xf]
    %v287 = vld [vmem:[#allocation8 + $0x8] sm:$0xf]
    %v288 = vld [vmem:[#allocation8 + $0xc] sm:$0xf]
    %v289 = vld [vmem:[#allocation8 + $0x10] sm:$0xf]
    %v290 = vld [vmem:[#allocation8 + $0x14] sm:$0xf]
    %v291 = vld [vmem:[#allocation8 + $0x18] sm:$0xf]
    %v292 = vld [vmem:[#allocation8 + $0x1c] sm:$0xf]
    %v293 = vld [vmem:[#allocation8 + $0x20] sm:$0xf]
    %v294 = vld [vmem:[#allocation8 + $0x24] sm:$0xf]
    %v295 = vld [vmem:[#allocation8 + $0x28] sm:$0xf]
    %v296 = vld [vmem:[#allocation8 + $0x2c] sm:$0xf]
    %v297 = vld [vmem:[#allocation8 + $0x30] sm:$0xf]
    %v298 = vld [vmem:[#allocation8 + $0x34] sm:$0xf]
    %v299 = vld [vmem:[#allocation8 + $0x38] sm:$0xf]
    %v300 = vld [vmem:[#allocation8 + $0x3c] sm:$0xf]
    %v317 = vunpack.c.l.b16 %v285
    %v318 = vunpack.c.l.b16 %v286
    %v319 = vunpack.c.l.b16 %v287
    %v320 = vunpack.c.l.b16 %v288
    %v321 = vunpack.c.l.b16 %v289
    %v322 = vunpack.c.l.b16 %v290
    %v323 = vunpack.c.l.b16 %v291
    %v324 = vunpack.c.l.b16 %v292
    %v325 = vunpack.c.l.b16 %v293
    %v326 = vunpack.c.l.b16 %v294
    %v327 = vunpack.c.l.b16 %v295
    %v328 = vunpack.c.l.b16 %v296
    %v329 = vunpack.c.l.b16 %v297
    %v330 = vunpack.c.l.b16 %v298
    %v331 = vunpack.c.l.b16 %v299
    %v332 = vunpack.c.l.b16 %v300
    %v333 = vpack.c.b16 %v318, %v317
    %v334 = vpack.c.b16 %v320, %v319
    %v335 = vpack.c.b16 %v322, %v321
    %v336 = vpack.c.b16 %v324, %v323
    %v337 = vpack.c.b16 %v326, %v325
    %v338 = vpack.c.b16 %v328, %v327
    %v339 = vpack.c.b16 %v330, %v329
    %v340 = vpack.c.b16 %v332, %v331
    %349 = vmatprep.subr.bf16.mxu0 0
    %350 = vmatpush1.bf16.msra.mxu0 %v333
    %351 = vmatprep.subr.bf16.mxu0 0
    %352 = vmatpush1.bf16.msra.mxu0 %v334
    %353 = vmatprep.subr.bf16.mxu0 0
    %354 = vmatpush1.bf16.msra.mxu0 %v335
    %355 = vmatprep.subr.bf16.mxu0 0
    %356 = vmatpush1.bf16.msra.mxu0 %v336
    %357 = vmatprep.subr.bf16.mxu0 0
    %358 = vmatpush1.bf16.msra.mxu0 %v337
    %359 = vmatprep.subr.bf16.mxu0 0
    %360 = vmatpush1.bf16.msra.mxu0 %v338
    %361 = vmatprep.subr.bf16.mxu0 0
    %362 = vmatpush1.bf16.msra.mxu0 %v339
    %363 = vmatprep.subr.bf16.mxu0 0
    %364 = vmatpush1.bf16.msra.mxu0 %v340
    %365 = vmatprep.subr.bf16.mxu0 0
    %366 = vmatpush1.bf16.msra.mxu0 0
    %367 = vmatprep.subr.bf16.mxu0 0
    %368 = vmatpush1.bf16.msra.mxu0 0
    %369 = vmatprep.subr.bf16.mxu0 0
    %370 = vmatpush1.bf16.msra.mxu0 0
    %371 = vmatprep.subr.bf16.mxu0 0
    %372 = vmatpush1.bf16.msra.mxu0 0
    %373 = vmatprep.subr.bf16.mxu0 0
    %374 = vmatpush1.bf16.msra.mxu0 0
    %375 = vmatprep.subr.bf16.mxu0 0
    %376 = vmatpush1.bf16.msra.mxu0 0
    %377 = vmatprep.subr.bf16.mxu0 0
    %378 = vmatpush1.bf16.msra.mxu0 0
    %379 = vmatprep.subr.bf16.mxu0 0
    %380 = vmatpush1.bf16.msra.mxu0 0
    %381 = vmatprep.mubr.bf16.mxu0 0
    %382 = vmatmul.mubr.bf16.gmra.mrb[0].mxu0 %v284
    %v383 = vpop.f32.mrb[0].mxu0
    %v384 = vadd.f32 0.0, %v383
    %v385 = vpop.f32.mrb[0].mxu0
    %v386 = vpop.f32.mrb[0].mxu0
    %v387 = vpop.f32.mrb[0].mxu0
    %388 = vdwg.mxu0
    %389 = vst [vmem:[#allocation10] sm:$0xff] %v384
    // Predicated region
    $region34: #{tpu_custom_call.1} parent=1 // pred_check
      _
    $region35: #{tpu_custom_call.1} parent=1 // pred_check_branch
      %391 = sbr.rel (0) target = $region37
    $region36: #{tpu_custom_call.1} parent=1 // pred_region
      %s393 = ssub.s32 128, 128
      %394 = vsyncadd [#allocation4], %s393
      %s396 = sshll.u32 [#allocation10], 4
      %s397 = int_to_ptr.vmem [resolvable:$true] %s396
      %399 = dma.vmem_to_hbm [thread:$0]  %s397, 128, %s4, [#allocation4]
    $region37: #{tpu_custom_call.1} parent=1 // pred_fallthru
      _
    // Predicated region
    $region38: #{tpu_custom_call.1} parent=1 // pred_check
      _
    $region39: #{tpu_custom_call.1} parent=1 // pred_check_branch
      %401 = sbr.rel (0) target = $region41
    $region40: #{tpu_custom_call.1} parent=1 // pred_region
      %402 = dma.done [#allocation4], 128
    $region41: #{tpu_custom_call.1} parent=1 // pred_fallthru
      _
    %403 = vsyncpa [#allocation3], 1
    %404 = vsyncpa [#allocation6], 1
    %405 = vsyncpa [#allocation9], 1
    %406 = vsyncpa [#allocation4], 1

// kernel: tpu_custom_call.1
$region0: #{tpu_custom_call.1}
  #allocation0 [shape = 'u32[]', space=smem, size = 0x4, offset = 0x4, fixed_abs, tag = 'smem constant byte address 0x4 - core index']
  #allocation1 [shape = 'u32[144,128]{1,0:T(1,128)}', space=vmem, size = 0x12000, scoped, tag = 'internal scratch']
  %s0 = inlined_call_operand.hbm [shape: bf16[8,128], index: 0, kind: input, shape index: {}]
  %s1 = inlined_call_operand.hbm [shape: bf16[128,128], index: 1, kind: input, shape index: {}]
  %s2 = inlined_call_operand.hbm [shape: bf16[128,128], index: 2, kind: input, shape index: {}]
  %s3 = inlined_call_operand.hbm [shape: bf16[128,128], index: 3, kind: input, shape index: {}]
  %s4 = inlined_call_operand.hbm [shape: f32[8,128], index: 4, kind: output, shape index: {}]
  %s5 = sld [smem:[#allocation0]]
  $region42: #{tpu_custom_call.1} parent=0
    _
  %s7 = ssub.s32 1, %s5
  %s8 = scalar_select 0, %s7, %s5
  $region1: #{tpu_custom_call.1} parent=0
    #allocation2 [shape = 'u8[2048]{0}', space=vmem, size = 0x800, scoped, tag = 'input window, operand 0, single buffered']
    #allocation3 [shape = 's32[1]{0}', space=sflag, size = 0x4, scoped, tag = 'scoped memory for tpu_custom_call.1']
    #allocation4 [shape = 's32[1]{0}', space=sflag, size = 0x4, scoped, tag = 'scoped memory for tpu_custom_call.1']
    #allocation5 [shape = 'u8[32768]{0}', space=vmem, size = 0x8000, scoped, tag = 'input window, operand 1, single buffered']
    #allocation6 [shape = 's32[1]{0}', space=sflag, size = 0x4, scoped, tag = 'scoped memory for tpu_custom_call.1']
    #allocation7 [shape = 'u8[32768]{0}', space=vmem, size = 0x8000, scoped, tag = 'input window, operand 2, single buffered']
    #allocation8 [shape = 'u8[32768]{0}', space=vmem, size = 0x8000, scoped, tag = 'input window, operand 3, single buffered']
    #allocation9 [shape = 's32[1]{0}', space=sflag, size = 0x4, scoped, tag = 'scoped memory for tpu_custom_call.1']
    #allocation10 [shape = 'u8[4096]{0}', space=vmem, size = 0x1000, scoped, tag = 'output window, operand 0, single buffered']
    %9 = vsyncpa [#allocation3], 0
    %10 = vsyncpa [#allocation6], 0
    %11 = vsyncpa [#allocation9], 0
    %12 = vsyncpa [#allocation4], 0
    // Predicated region
    $region2: #{tpu_custom_call.1} parent=1 // pred_check
      _
    $region3: #{tpu_custom_call.1} parent=1 // pred_check_branch
      %14 = sbr.rel (0) target = $region5
    $region4: #{tpu_custom_call.1} parent=1 // pred_region
      %s16 = ssub.s32 64, 64
      %17 = vsyncadd [#allocation3], %s16
      %s19 = sshll.u32 [#allocation2], 4
      %s20 = int_to_ptr.vmem [resolvable:$true] %s19
      %22 = dma.hbm_to_vmem [thread:$0]  %s0, 64, %s20, [#allocation3]
    $region5: #{tpu_custom_call.1} parent=1 // pred_fallthru
      _
    // Predicated region
    $region6: #{tpu_custom_call.1} parent=1 // pred_check
      _
    $region7: #{tpu_custom_call.1} parent=1 // pred_check_branch
      %24 = sbr.rel (0) target = $region9
    $region8: #{tpu_custom_call.1} parent=1 // pred_region
      %s26 = ssub.s32 1024, 1024
      %27 = vsyncadd [#allocation6], %s26
      %s28 = sshll.u32 [#allocation5], 4
      %s29 = int_to_ptr.vmem [resolvable:$true] %s28
      %34 = dma.hbm_to_vmem [thread:$0]  %s1, 1024, %s29, [#allocation6], 64, 64, 4
    $region9: #{tpu_custom_call.1} parent=1 // pred_fallthru
      _
    // Predicated region
    $region10: #{tpu_custom_call.1} parent=1 // pred_check
      _
    $region11: #{tpu_custom_call.1} parent=1 // pred_check_branch
      %36 = sbr.rel (0) target = $region13
    $region12: #{tpu_custom_call.1} parent=1 // pred_region
      %s38 = ssub.s32 1024, 1024
      %39 = vsyncadd [#allocation6], %s38
      %s40 = sshll.u32 [#allocation7], 4
      %s41 = int_to_ptr.vmem [resolvable:$true] %s40
      %46 = dma.hbm_to_vmem [thread:$0]  %s2, 1024, %s41, [#allocation6], 64, 64, 4
    $region13: #{tpu_custom_call.1} parent=1 // pred_fallthru
      _
    // Predicated region
    $region14: #{tpu_custom_call.1} parent=1 // pred_check
      _
    $region15: #{tpu_custom_call.1} parent=1 // pred_check_branch
      %48 = sbr.rel (0) target = $region17
    $region16: #{tpu_custom_call.1} parent=1 // pred_region
      %s50 = ssub.s32 1024, 1024
      %51 = vsyncadd [#allocation9], %s50
      %s52 = sshll.u32 [#allocation8], 4
      %s53 = int_to_ptr.vmem [resolvable:$true] %s52
      %58 = dma.hbm_to_vmem [thread:$0]  %s3, 1024, %s53, [#allocation9], 64, 64, 4
    $region17: #{tpu_custom_call.1} parent=1 // pred_fallthru
      _
    // Predicated region
    $region18: #{tpu_custom_call.1} parent=1 // pred_check
      _
    $region19: #{tpu_custom_call.1} parent=1 // pred_check_branch
      %60 = sbr.rel (0) target = $region21
    $region20: #{tpu_custom_call.1} parent=1 // pred_region
      %61 = dma.done [#allocation3], 64
    $region21: #{tpu_custom_call.1} parent=1 // pred_fallthru
      _
    // Predicated region
    $region22: #{tpu_custom_call.1} parent=1 // pred_check
      _
    $region23: #{tpu_custom_call.1} parent=1 // pred_check_branch
      %63 = sbr.rel (0) target = $region25
    $region24: #{tpu_custom_call.1} parent=1 // pred_region
      %64 = dma.done [#allocation6], 1024
    $region25: #{tpu_custom_call.1} parent=1 // pred_fallthru
      _
    // Predicated region
    $region26: #{tpu_custom_call.1} parent=1 // pred_check
      _
    $region27: #{tpu_custom_call.1} parent=1 // pred_check_branch
      %66 = sbr.rel (0) target = $region29
    $region28: #{tpu_custom_call.1} parent=1 // pred_region
      %67 = dma.done [#allocation6], 1024
    $region29: #{tpu_custom_call.1} parent=1 // pred_fallthru
      _
    // Predicated region
    $region30: #{tpu_custom_call.1} parent=1 // pred_check
      _
    $region31: #{tpu_custom_call.1} parent=1 // pred_check_branch
      %69 = sbr.rel (0) target = $region33
    $region32: #{tpu_custom_call.1} parent=1 // pred_region
      %70 = dma.done [#allocation9], 1024
    $region33: #{tpu_custom_call.1} parent=1 // pred_fallthru
      _
    %v72 = vld [vmem:[#allocation2] sm:$0xf]
    %v73 = vld [vmem:[#allocation5] sm:$0xf]
    %v74 = vld [vmem:[#allocation5 + $0x4] sm:$0xf]
    %v75 = vld [vmem:[#allocation5 + $0x8] sm:$0xf]
    %v76 = vld [vmem:[#allocation5 + $0xc] sm:$0xf]
    %v77 = vld [vmem:[#allocation5 + $0x10] sm:$0xf]
    %v78 = vld [vmem:[#allocation5 + $0x14] sm:$0xf]
    %v79 = vld [vmem:[#allocation5 + $0x18] sm:$0xf]
    %v80 = vld [vmem:[#allocation5 + $0x1c] sm:$0xf]
    %v81 = vld [vmem:[#allocation5 + $0x20] sm:$0xf]
    %v82 = vld [vmem:[#allocation5 + $0x24] sm:$0xf]
    %v83 = vld [vmem:[#allocation5 + $0x28] sm:$0xf]
    %v84 = vld [vmem:[#allocation5 + $0x2c] sm:$0xf]
    %v85 = vld [vmem:[#allocation5 + $0x30] sm:$0xf]
    %v86 = vld [vmem:[#allocation5 + $0x34] sm:$0xf]
    %v87 = vld [vmem:[#allocation5 + $0x38] sm:$0xf]
    %v88 = vld [vmem:[#allocation5 + $0x3c] sm:$0xf]
    %v105 = vunpack.c.l.b16 %v73
    %v106 = vunpack.c.l.b16 %v74
    %v107 = vunpack.c.l.b16 %v75
    %v108 = vunpack.c.l.b16 %v76
    %v109 = vunpack.c.l.b16 %v77
    %v110 = vunpack.c.l.b16 %v78
    %v111 = vunpack.c.l.b16 %v79
    %v112 = vunpack.c.l.b16 %v80
    %v113 = vunpack.c.l.b16 %v81
    %v114 = vunpack.c.l.b16 %v82
    %v115 = vunpack.c.l.b16 %v83
    %v116 = vunpack.c.l.b16 %v84
    %v117 = vunpack.c.l.b16 %v85
    %v118 = vunpack.c.l.b16 %v86
    %v119 = vunpack.c.l.b16 %v87
    %v120 = vunpack.c.l.b16 %v88
    %v121 = vpack.c.b16 %v106, %v105
    %v122 = vpack.c.b16 %v108, %v107
    %v123 = vpack.c.b16 %v110, %v109
    %v124 = vpack.c.b16 %v112, %v111
    %v125 = vpack.c.b16 %v114, %v113
    %v126 = vpack.c.b16 %v116, %v115
    %v127 = vpack.c.b16 %v118, %v117
    %v128 = vpack.c.b16 %v120, %v119
    %137 = vmatprep.subr.bf16.mxu0 0
    %138 = vmatpush1.bf16.msra.mxu0 %v121
    %139 = vmatprep.subr.bf16.mxu0 0
    %140 = vmatpush1.bf16.msra.mxu0 %v122
    %141 = vmatprep.subr.bf16.mxu0 0
    %142 = vmatpush1.bf16.msra.mxu0 %v123
    %143 = vmatprep.subr.bf16.mxu0 0
    %144 = vmatpush1.bf16.msra.mxu0 %v124
    %145 = vmatprep.subr.bf16.mxu0 0
    %146 = vmatpush1.bf16.msra.mxu0 %v125
    %147 = vmatprep.subr.bf16.mxu0 0
    %148 = vmatpush1.bf16.msra.mxu0 %v126
    %149 = vmatprep.subr.bf16.mxu0 0
    %150 = vmatpush1.bf16.msra.mxu0 %v127
    %151 = vmatprep.subr.bf16.mxu0 0
    %152 = vmatpush1.bf16.msra.mxu0 %v128
    %153 = vmatprep.subr.bf16.mxu0 0
    %154 = vmatpush1.bf16.msra.mxu0 0
    %155 = vmatprep.subr.bf16.mxu0 0
    %156 = vmatpush1.bf16.msra.mxu0 0
    %157 = vmatprep.subr.bf16.mxu0 0
    %158 = vmatpush1.bf16.msra.mxu0 0
    %159 = vmatprep.subr.bf16.mxu0 0
    %160 = vmatpush1.bf16.msra.mxu0 0
    %161 = vmatprep.subr.bf16.mxu0 0
    %162 = vmatpush1.bf16.msra.mxu0 0
    %163 = vmatprep.subr.bf16.mxu0 0
    %164 = vmatpush1.bf16.msra.mxu0 0
    %165 = vmatprep.subr.bf16.mxu0 0
    %166 = vmatpush1.bf16.msra.mxu0 0
    %167 = vmatprep.subr.bf16.mxu0 0
    %168 = vmatpush1.bf16.msra.mxu0 0
    %169 = vmatprep.mubr.bf16.mxu0 0
    %170 = vmatmul.mubr.bf16.gmra.mrb[0].mxu0 %v72
    %v171 = vpop.f32.mrb[0].mxu0
    %v172 = vadd.f32 0.0, %v171
    %v173 = vpop.f32.mrb[0].mxu0
    %v174 = vpop.f32.mrb[0].mxu0
    %v175 = vpop.f32.mrb[0].mxu0
    %176 = vdwg.mxu0
    %v177 = vmax.f32 %v172, 0.0
    %v178 = vpack.c.bf16 %v177, %v177
    %v179 = vld [vmem:[#allocation7] sm:$0xf]
    %v180 = vld [vmem:[#allocation7 + $0x4] sm:$0xf]
    %v181 = vld [vmem:[#allocation7 + $0x8] sm:$0xf]
    %v182 = vld [vmem:[#allocation7 + $0xc] sm:$0xf]
    %v183 = vld [vmem:[#allocation7 + $0x10] sm:$0xf]
    %v184 = vld [vmem:[#allocation7 + $0x14] sm:$0xf]
    %v185 = vld [vmem:[#allocation7 + $0x18] sm:$0xf]
    %v186 = vld [vmem:[#allocation7 + $0x1c] sm:$0xf]
    %v187 = vld [vmem:[#allocation7 + $0x20] sm:$0xf]
    %v188 = vld [vmem:[#allocation7 + $0x24] sm:$0xf]
    %v189 = vld [vmem:[#allocation7 + $0x28] sm:$0xf]
    %v190 = vld [vmem:[#allocation7 + $0x2c] sm:$0xf]
    %v191 = vld [vmem:[#allocation7 + $0x30] sm:$0xf]
    %v192 = vld [vmem:[#allocation7 + $0x34] sm:$0xf]
    %v193 = vld [vmem:[#allocation7 + $0x38] sm:$0xf]
    %v194 = vld [vmem:[#allocation7 + $0x3c] sm:$0xf]
    %v211 = vunpack.c.l.b16 %v179
    %v212 = vunpack.c.l.b16 %v180
    %v213 = vunpack.c.l.b16 %v181
    %v214 = vunpack.c.l.b16 %v182
    %v215 = vunpack.c.l.b16 %v183
    %v216 = vunpack.c.l.b16 %v184
    %v217 = vunpack.c.l.b16 %v185
    %v218 = vunpack.c.l.b16 %v186
    %v219 = vunpack.c.l.b16 %v187
    %v220 = vunpack.c.l.b16 %v188
    %v221 = vunpack.c.l.b16 %v189
    %v222 = vunpack.c.l.b16 %v190
    %v223 = vunpack.c.l.b16 %v191
    %v224 = vunpack.c.l.b16 %v192
    %v225 = vunpack.c.l.b16 %v193
    %v226 = vunpack.c.l.b16 %v194
    %v227 = vpack.c.b16 %v212, %v211
    %v228 = vpack.c.b16 %v214, %v213
    %v229 = vpack.c.b16 %v216, %v215
    %v230 = vpack.c.b16 %v218, %v217
    %v231 = vpack.c.b16 %v220, %v219
    %v232 = vpack.c.b16 %v222, %v221
    %v233 = vpack.c.b16 %v224, %v223
    %v234 = vpack.c.b16 %v226, %v225
    %243 = vmatprep.subr.bf16.mxu0 0
    %244 = vmatpush1.bf16.msra.mxu0 %v227
    %245 = vmatprep.subr.bf16.mxu0 0
    %246 = vmatpush1.bf16.msra.mxu0 %v228
    %247 = vmatprep.subr.bf16.mxu0 0
    %248 = vmatpush1.bf16.msra.mxu0 %v229
    %249 = vmatprep.subr.bf16.mxu0 0
    %250 = vmatpush1.bf16.msra.mxu0 %v230
    %251 = vmatprep.subr.bf16.mxu0 0
    %252 = vmatpush1.bf16.msra.mxu0 %v231
    %253 = vmatprep.subr.bf16.mxu0 0
    %254 = vmatpush1.bf16.msra.mxu0 %v232
    %255 = vmatprep.subr.bf16.mxu0 0
    %256 = vmatpush1.bf16.msra.mxu0 %v233
    %257 = vmatprep.subr.bf16.mxu0 0
    %258 = vmatpush1.bf16.msra.mxu0 %v234
    %259 = vmatprep.subr.bf16.mxu0 0
    %260 = vmatpush1.bf16.msra.mxu0 0
    %261 = vmatprep.subr.bf16.mxu0 0
    %262 = vmatpush1.bf16.msra.mxu0 0
    %263 = vmatprep.subr.bf16.mxu0 0
    %264 = vmatpush1.bf16.msra.mxu0 0
    %265 = vmatprep.subr.bf16.mxu0 0
    %266 = vmatpush1.bf16.msra.mxu0 0
    %267 = vmatprep.subr.bf16.mxu0 0
    %268 = vmatpush1.bf16.msra.mxu0 0
    %269 = vmatprep.subr.bf16.mxu0 0
    %270 = vmatpush1.bf16.msra.mxu0 0
    %271 = vmatprep.subr.bf16.mxu0 0
    %272 = vmatpush1.bf16.msra.mxu0 0
    %273 = vmatprep.subr.bf16.mxu0 0
    %274 = vmatpush1.bf16.msra.mxu0 0
    %275 = vmatprep.mubr.bf16.mxu0 0
    %276 = vmatmul.mubr.bf16.gmra.mrb[0].mxu0 %v178
    %v277 = vpop.f32.mrb[0].mxu0
    %v278 = vadd.f32 0.0, %v277
    %v279 = vpop.f32.mrb[0].mxu0
    %v280 = vpop.f32.mrb[0].mxu0
    %v281 = vpop.f32.mrb[0].mxu0
    %282 = vdwg.mxu0
    %v283 = vmax.f32 %v278, 0.0
    %v284 = vpack.c.bf16 %v283, %v283
    %v285 = vld [vmem:[#allocation8] sm:$0xf]
    %v286 = vld [vmem:[#allocation8 + $0x4] sm:$0xf]
    %v287 = vld [vmem:[#allocation8 + $0x8] sm:$0xf]
    %v288 = vld [vmem:[#allocation8 + $0xc] sm:$0xf]
    %v289 = vld [vmem:[#allocation8 + $0x10] sm:$0xf]
    %v290 = vld [vmem:[#allocation8 + $0x14] sm:$0xf]
    %v291 = vld [vmem:[#allocation8 + $0x18] sm:$0xf]
    %v292 = vld [vmem:[#allocation8 + $0x1c] sm:$0xf]
    %v293 = vld [vmem:[#allocation8 + $0x20] sm:$0xf]
    %v294 = vld [vmem:[#allocation8 + $0x24] sm:$0xf]
    %v295 = vld [vmem:[#allocation8 + $0x28] sm:$0xf]
    %v296 = vld [vmem:[#allocation8 + $0x2c] sm:$0xf]
    %v297 = vld [vmem:[#allocation8 + $0x30] sm:$0xf]
    %v298 = vld [vmem:[#allocation8 + $0x34] sm:$0xf]
    %v299 = vld [vmem:[#allocation8 + $0x38] sm:$0xf]
    %v300 = vld [vmem:[#allocation8 + $0x3c] sm:$0xf]
    %v317 = vunpack.c.l.b16 %v285
    %v318 = vunpack.c.l.b16 %v286
    %v319 = vunpack.c.l.b16 %v287
    %v320 = vunpack.c.l.b16 %v288
    %v321 = vunpack.c.l.b16 %v289
    %v322 = vunpack.c.l.b16 %v290
    %v323 = vunpack.c.l.b16 %v291
    %v324 = vunpack.c.l.b16 %v292
    %v325 = vunpack.c.l.b16 %v293
    %v326 = vunpack.c.l.b16 %v294
    %v327 = vunpack.c.l.b16 %v295
    %v328 = vunpack.c.l.b16 %v296
    %v329 = vunpack.c.l.b16 %v297
    %v330 = vunpack.c.l.b16 %v298
    %v331 = vunpack.c.l.b16 %v299
    %v332 = vunpack.c.l.b16 %v300
    %v333 = vpack.c.b16 %v318, %v317
    %v334 = vpack.c.b16 %v320, %v319
    %v335 = vpack.c.b16 %v322, %v321
    %v336 = vpack.c.b16 %v324, %v323
    %v337 = vpack.c.b16 %v326, %v325
    %v338 = vpack.c.b16 %v328, %v327
    %v339 = vpack.c.b16 %v330, %v329
    %v340 = vpack.c.b16 %v332, %v331
    %349 = vmatprep.subr.bf16.mxu0 0
    %350 = vmatpush1.bf16.msra.mxu0 %v333
    %351 = vmatprep.subr.bf16.mxu0 0
    %352 = vmatpush1.bf16.msra.mxu0 %v334
    %353 = vmatprep.subr.bf16.mxu0 0
    %354 = vmatpush1.bf16.msra.mxu0 %v335
    %355 = vmatprep.subr.bf16.mxu0 0
    %356 = vmatpush1.bf16.msra.mxu0 %v336
    %357 = vmatprep.subr.bf16.mxu0 0
    %358 = vmatpush1.bf16.msra.mxu0 %v337
    %359 = vmatprep.subr.bf16.mxu0 0
    %360 = vmatpush1.bf16.msra.mxu0 %v338
    %361 = vmatprep.subr.bf16.mxu0 0
    %362 = vmatpush1.bf16.msra.mxu0 %v339
    %363 = vmatprep.subr.bf16.mxu0 0
    %364 = vmatpush1.bf16.msra.mxu0 %v340
    %365 = vmatprep.subr.bf16.mxu0 0
    %366 = vmatpush1.bf16.msra.mxu0 0
    %367 = vmatprep.subr.bf16.mxu0 0
    %368 = vmatpush1.bf16.msra.mxu0 0
    %369 = vmatprep.subr.bf16.mxu0 0
    %370 = vmatpush1.bf16.msra.mxu0 0
    %371 = vmatprep.subr.bf16.mxu0 0
    %372 = vmatpush1.bf16.msra.mxu0 0
    %373 = vmatprep.subr.bf16.mxu0 0
    %374 = vmatpush1.bf16.msra.mxu0 0
    %375 = vmatprep.subr.bf16.mxu0 0
    %376 = vmatpush1.bf16.msra.mxu0 0
    %377 = vmatprep.subr.bf16.mxu0 0
    %378 = vmatpush1.bf16.msra.mxu0 0
    %379 = vmatprep.subr.bf16.mxu0 0
    %380 = vmatpush1.bf16.msra.mxu0 0
    %381 = vmatprep.mubr.bf16.mxu0 0
    %382 = vmatmul.mubr.bf16.gmra.mrb[0].mxu0 %v284
    %v383 = vpop.f32.mrb[0].mxu0
    %v384 = vadd.f32 0.0, %v383
    %v385 = vpop.f32.mrb[0].mxu0
    %v386 = vpop.f32.mrb[0].mxu0
    %v387 = vpop.f32.mrb[0].mxu0
    %388 = vdwg.mxu0
    %389 = vst [vmem:[#allocation10] sm:$0xff] %v384
    // Predicated region
    $region34: #{tpu_custom_call.1} parent=1 // pred_check
      _
    $region35: #{tpu_custom_call.1} parent=1 // pred_check_branch
      %391 = sbr.rel (0) target = $region37
    $region36: #{tpu_custom_call.1} parent=1 // pred_region
      %s393 = ssub.s32 128, 128
      %394 = vsyncadd [#allocation4], %s393
      %s396 = sshll.u32 [#allocation10], 4
      %s397 = int_to_ptr.vmem [resolvable:$true] %s396
      %399 = dma.vmem_to_hbm [thread:$0]  %s397, 128, %s4, [#allocation4]
    $region37: #{tpu_custom_call.1} parent=1 // pred_fallthru
      _
    // Predicated region
    $region38: #{tpu_custom_call.1} parent=1 // pred_check
      _
    $region39: #{tpu_custom_call.1} parent=1 // pred_check_branch
      %401 = sbr.rel (0) target = $region41
    $region40: #{tpu_custom_call.1} parent=1 // pred_region
      %402 = dma.done [#allocation4], 128
    $region41: #{tpu_custom_call.1} parent=1 // pred_fallthru
      _
    %403 = vsyncpa [#allocation3], 1
    %404 = vsyncpa [#allocation6], 1
    %405 = vsyncpa [#allocation9], 1
    %406 = vsyncpa [#allocation4], 1

</llo_original>
